<compile_context>
chip_gen: v5e
topology: v5e:2x2
jax: 0.10.0
libtpu: 0.0.40
codegen_flags: <defaults>
</compile_context>

<pallas_src>
import functools

import jax
import jax.numpy as jnp
from jax import lax
from jax.experimental import pallas as pl
from jax.experimental.pallas import tpu as pltpu

NUM_CLASSES = 28
FTR_NUM = 512        # resnet18 / resnet34 branch of the module -> ftr_num = 512
STEM_COUT = 64
DROP_P = 0.4
KDIM = 7 * 7 * 4     # 196: full im2col contraction (kh, kw, cin)
KW_DIM = 7 * 4       # 28:  kw/channel part done host-side


def _round_up(x, m):
    return ((x + m - 1) // m) * m


# ----------------------------------------------------------------------------
# Fused kernel: per sample, rebuild the (M, 196) stem patches on-chip from the
# kw-im2col'd slab (kh replication via 7 row-shifted lane-concats), run the
# 7x7/stride-2 stem conv as one K=196 MXU matmul per chunk, ReLU, and
# accumulate the masked spatial sum (AdaptiveAvgPool numerator).
# Grid = (batch,), whole-sample patch slab per step.
# ----------------------------------------------------------------------------
def _stem_pool_kernel(p_ref, w_ref, o_ref, *, n_chunks, chunk_rows, ho, wo):
    # p_ref: (1, 2, A_pad, Wo, 28) bf16   [parity, row, out-col, kw*4+c]
    # w_ref: (196, 64)            bf16
    # o_ref: (1, 1, 64)           f32     per-sample spatial SUM of relu(conv)
    w = w_ref[...]
    m = chunk_rows * wo

    def chunk(c, acc):
        r0 = c * chunk_rows
        # kh part of the im2col, done on-chip:  kh = 2*dh + ph.
        slabs = [p_ref[0, kh & 1, pl.ds(r0 + (kh >> 1), chunk_rows), :, :]
                 for kh in range(7)]                       # 7 x (R, Wo, 28)
        patch = jnp.concatenate(slabs, axis=-1)            # (R, Wo, 196)
        patch = patch.reshape(m, KDIM)                     # (M, 196)
        stem = jnp.dot(patch, w,
                       preferred_element_type=jnp.float32)  # (M, 64) on MXU
        stem = jnp.maximum(stem, 0.0)                      # ReLU (stand-in body)
        # Mask output rows past the true Ho: the tail chunk's extra rows sample
        # real bottom-edge pixels and would otherwise corrupt the pooled mean.
        row = lax.broadcasted_iota(jnp.int32, (m, 1), 0)
        stem = jnp.where(row < (ho - r0) * wo, stem, 0.0)
        return acc + jnp.sum(stem, axis=0, keepdims=True)  # (1, 64)

    acc = jnp.zeros((1, STEM_COUT), jnp.float32)
    if n_chunks <= 4:                                      # short static trip count
        for c in range(n_chunks):
            acc = chunk(c, acc)
    else:
        acc = lax.fori_loop(0, n_chunks, chunk, acc, unroll=2)
    o_ref[0] = acc


# ----------------------------------------------------------------------------
# Host-side part of the im2col (cheap): stride-2 kw/channel patches (28 lanes
# per output column) + H-parity split.  No kh replication here.
# ----------------------------------------------------------------------------
def _build_kw_patches(x_nhwc):
    n, h, w, _ = x_nhwc.shape
    ho = (h - 1) // 2 + 1                                  # conv: k=7, s=2, p=3
    wo = (w - 1) // 2 + 1
    x = x_nhwc.astype(jnp.bfloat16)
    xp = jnp.pad(x, ((0, 0), (3, 3), (3, 3), (0, 0)))
    hp = _round_up(h + 6, 2)                               # even for parity split
    wp = _round_up(w + 6, 2)
    xp = jnp.pad(xp, ((0, 0), (0, hp - h - 6), (0, wp - w - 6), (0, 0)))
    # P0[n, r, wo, kw*4 + c] = xp[n, r, 2*wo + kw, c]
    cols = [xp[:, :, kw:kw + 2 * wo:2, :] for kw in range(7)]
    p0 = jnp.concatenate(cols, axis=-1)                    # (N, Hp, Wo, 28)
    # H-parity split: P[n, ph, a, wo, :] = P0[n, 2*a + ph, wo, :]
    p = p0.reshape(n, hp // 2, 2, wo, KW_DIM).transpose(0, 2, 1, 3, 4)
    return p, ho, wo                                       # (N, 2, A, Wo, 28)


def protein_net_forward(x_nchw, params, rng_key, training=True):
    # NCHW (PyTorch) -> NHWC (kernel layout)
    x = jnp.transpose(x_nchw, (0, 2, 3, 1))
    n = x.shape[0]

    p, ho, wo = _build_kw_patches(x)
    a = p.shape[2]
    s = ho * wo                                            # true conv1 spatial size

    # Compute chunking: whole-sample DMA tile, ~512-row MXU/ReLU/reduce chunks.
    chunk_rows = max(1, min(ho, max(1, 512 // wo)))
    n_chunks = -(-ho // chunk_rows)
    a_pad = max(a, n_chunks * chunk_rows + 3)              # room for kh shifts (<=3)
    if a_pad > a:
        p = jnp.pad(p, ((0, 0), (0, 0), (0, a_pad - a), (0, 0), (0, 0)))

    # Stem conv weight: torch (Cout, Cin, kh, kw) -> (kh, kw, Cin, Cout) to match
    # the (kh, kw, c) patch ordering -> (196, 64), bf16.  No K zero-pad.
    w_stem = jnp.transpose(params["conv1_w"], (2, 3, 1, 0))
    w_stem = w_stem.reshape(KDIM, STEM_COUT).astype(jnp.bfloat16)

    # VMEM budget: 2 double-buffered whole-sample patch blocks + compute temps;
    # floor 32 MiB, cap 48 MiB (v7x has 64 MiB physical VMEM per TensorCore).
    # TODO(synk): row-band the patch slab for images much larger than 512x512.
    block_bytes = 2 * a_pad * wo * KW_DIM * 2
    vmem_limit = int(min(max(2 * block_bytes + (8 << 20), 32 << 20), 48 << 20))

    sums = pl.pallas_call(
        functools.partial(_stem_pool_kernel, n_chunks=n_chunks,
                          chunk_rows=chunk_rows, ho=ho, wo=wo),
        out_shape=jax.ShapeDtypeStruct((n, 1, STEM_COUT), jnp.float32),
        grid=(n,),
        in_specs=[
            pl.BlockSpec((1, 2, a_pad, wo, KW_DIM), lambda i: (i, 0, 0, 0, 0)),
            pl.BlockSpec((KDIM, STEM_COUT), lambda i: (0, 0)),
        ],
        out_specs=pl.BlockSpec((1, 1, STEM_COUT), lambda i: (i, 0, 0)),
        compiler_params=pltpu.CompilerParams(
            dimension_semantics=("parallel",),
            vmem_limit_bytes=vmem_limit),
    )(p, w_stem)

    # --- head hoisted out of the kernel (perf review): tiny XLA matmuls ------
    pooled = sums.reshape(n, STEM_COUT) * (1.0 / float(s))   # AdaptiveAvgPool2d(1)
    # TODO(synk): the real resnet18/34 backbone body (bn1, maxpool, residual
    # stages, pretrained weights) comes from an external library; the stand-in
    # is the in-kernel ReLU + this 1x1 projection to FTR_NUM so the
    # Linear(FTR_NUM, 28) head keeps the module's exact shape.
    feats = pooled @ params["proj_w"].astype(jnp.float32)    # (N, 512)
    # F.dropout2d(p=0.4) on (N, F, 1, 1): per-(sample, channel) mask + rescale.
    # TODO(synk): torch's dropout RNG stream is not reproducible here.
    if training:
        keep = jax.random.bernoulli(rng_key, 1.0 - DROP_P, (n, FTR_NUM))
        feats = feats * keep.astype(jnp.float32) * (1.0 / (1.0 - DROP_P))
    logits = (feats @ params["logit_w"].astype(jnp.float32)
              + params["logit_b"].astype(jnp.float32))
    return logits


def init_params(key):
    k1, k2, k3 = jax.random.split(key, 3)
    # Mirror the module's conv1 construction: 3-channel pretrained weight with
    # channel 2 duplicated and concatenated -> (64, 4, 7, 7).
    w3 = jax.random.normal(k1, (64, 3, 7, 7), jnp.float32) * 0.05
    conv1_w = jnp.concatenate([w3, w3[:, 2:3, :, :]], axis=1)
    proj_w = jax.random.normal(k2, (STEM_COUT, FTR_NUM), jnp.float32) * 0.05
    logit_w = jax.random.normal(k3, (FTR_NUM, NUM_CLASSES), jnp.float32) * 0.02
    logit_b = jnp.zeros((1, NUM_CLASSES), jnp.float32)
    return {"conv1_w": conv1_w, "proj_w": proj_w,
            "logit_w": logit_w, "logit_b": logit_b}


if __name__ == "__main__":
    key = jax.random.PRNGKey(0)
    pkey, xkey, dkey = jax.random.split(key, 3)
    params = init_params(pkey)

    # Small 4-channel protein image batch (NCHW), consistent with the module.
    x = jax.random.normal(xkey, (2, 4, 16, 16), jnp.float32)

    logits = jax.jit(protein_net_forward)(x, params, dkey)
    logits = jax.block_until_ready(logits)
    assert logits.shape == (2, NUM_CLASSES)
    assert bool(jnp.all(jnp.isfinite(logits)))
    print("KERNEL_OK")
</pallas_src>

<mosaic_0001>
module attributes {stable_mosaic.version = 11 : i64} {
  func.func @_stem_pool_kernel(%arg0: i32, %arg1: memref<1x2x11x8x28xbf16, #tpu.memory_space<vmem>>, %arg2: memref<196x64xbf16, #tpu.memory_space<vmem>>, %arg3: memref<1x1x64xf32, #tpu.memory_space<vmem>>) attributes {dimension_semantics = [#tpu.dimension_semantics<parallel>], iteration_bounds = array<i64: 2>, scalar_prefetch = 0 : i64, scratch_operands = 0 : i64, tpu.core_type = #tpu.core_type<tc>, window_params = [{transform_indices = @transform_0, window_bounds = array<i64: 1, 2, 11, 8, 28>}, {pipeline_mode = #tpu.pipeline_mode<synchronous>, transform_indices = @transform_1, window_bounds = array<i64: 196, 64>}, {transform_indices = @transform_2, window_bounds = array<i64: 1, 1, 64>}]} {
    %c0 = arith.constant 0 : index
    %c0_0 = arith.constant 0 : index
    %0 = vector.load %arg2[%c0, %c0_0] : memref<196x64xbf16, #tpu.memory_space<vmem>>, vector<196x64xbf16>
    %cst = arith.constant 0.000000e+00 : f32
    %1 = vector.broadcast %cst : f32 to vector<1x64xf32>
    %c0_1 = arith.constant 0 : index
    %c0_2 = arith.constant 0 : index
    %c0_3 = arith.constant 0 : index
    %c0_4 = arith.constant 0 : index
    %c0_5 = arith.constant 0 : index
    %2 = vector.load %arg1[%c0_1, %c0_2, %c0_3, %c0_4, %c0_5] : memref<1x2x11x8x28xbf16, #tpu.memory_space<vmem>>, vector<1x1x8x8x28xbf16>
    %3 = vector.shape_cast %2 : vector<1x1x8x8x28xbf16> to vector<8x8x28xbf16>
    %c0_6 = arith.constant 0 : index
    %c1 = arith.constant 1 : index
    %c0_7 = arith.constant 0 : index
    %c0_8 = arith.constant 0 : index
    %c0_9 = arith.constant 0 : index
    %4 = vector.load %arg1[%c0_6, %c1, %c0_7, %c0_8, %c0_9] : memref<1x2x11x8x28xbf16, #tpu.memory_space<vmem>>, vector<1x1x8x8x28xbf16>
    %5 = vector.shape_cast %4 : vector<1x1x8x8x28xbf16> to vector<8x8x28xbf16>
    %c0_10 = arith.constant 0 : index
    %c0_11 = arith.constant 0 : index
    %c1_12 = arith.constant 1 : index
    %c0_13 = arith.constant 0 : index
    %c0_14 = arith.constant 0 : index
    %6 = vector.load %arg1[%c0_10, %c0_11, %c1_12, %c0_13, %c0_14] : memref<1x2x11x8x28xbf16, #tpu.memory_space<vmem>>, vector<1x1x8x8x28xbf16>
    %7 = vector.shape_cast %6 : vector<1x1x8x8x28xbf16> to vector<8x8x28xbf16>
    %c0_15 = arith.constant 0 : index
    %c1_16 = arith.constant 1 : index
    %c1_17 = arith.constant 1 : index
    %c0_18 = arith.constant 0 : index
    %c0_19 = arith.constant 0 : index
    %8 = vector.load %arg1[%c0_15, %c1_16, %c1_17, %c0_18, %c0_19] : memref<1x2x11x8x28xbf16, #tpu.memory_space<vmem>>, vector<1x1x8x8x28xbf16>
    %9 = vector.shape_cast %8 : vector<1x1x8x8x28xbf16> to vector<8x8x28xbf16>
    %c0_20 = arith.constant 0 : index
    %c0_21 = arith.constant 0 : index
    %c2 = arith.constant 2 : index
    %c0_22 = arith.constant 0 : index
    %c0_23 = arith.constant 0 : index
    %10 = vector.load %arg1[%c0_20, %c0_21, %c2, %c0_22, %c0_23] : memref<1x2x11x8x28xbf16, #tpu.memory_space<vmem>>, vector<1x1x8x8x28xbf16>
    %11 = vector.shape_cast %10 : vector<1x1x8x8x28xbf16> to vector<8x8x28xbf16>
    %c0_24 = arith.constant 0 : index
    %c1_25 = arith.constant 1 : index
    %c2_26 = arith.constant 2 : index
    %c0_27 = arith.constant 0 : index
    %c0_28 = arith.constant 0 : index
    %12 = vector.load %arg1[%c0_24, %c1_25, %c2_26, %c0_27, %c0_28] : memref<1x2x11x8x28xbf16, #tpu.memory_space<vmem>>, vector<1x1x8x8x28xbf16>
    %13 = vector.shape_cast %12 : vector<1x1x8x8x28xbf16> to vector<8x8x28xbf16>
    %c0_29 = arith.constant 0 : index
    %c0_30 = arith.constant 0 : index
    %c3 = arith.constant 3 : index
    %c0_31 = arith.constant 0 : index
    %c0_32 = arith.constant 0 : index
    %14 = vector.load %arg1[%c0_29, %c0_30, %c3, %c0_31, %c0_32] : memref<1x2x11x8x28xbf16, #tpu.memory_space<vmem>>, vector<1x1x8x8x28xbf16>
    %15 = vector.shape_cast %14 : vector<1x1x8x8x28xbf16> to vector<8x8x28xbf16>
    %16 = tpu.concatenate %3, %5, %7, %9, %11, %13, %15 in 2 : vector<8x8x28xbf16>, vector<8x8x28xbf16>, vector<8x8x28xbf16>, vector<8x8x28xbf16>, vector<8x8x28xbf16>, vector<8x8x28xbf16>, vector<8x8x28xbf16> -> vector<8x8x196xbf16>
    %17 = vector.shape_cast %16 : vector<8x8x196xbf16> to vector<64x196xbf16>
    %cst_33 = arith.constant dense<0.000000e+00> : vector<64x64xf32>
    %18 = tpu.matmul %17, %0, %cst_33 {dimension_numbers = #tpu.dot_dimension_numbers<[1], [0], [0], [1], [0, 0, 1, 1], [], []>} : vector<64x196xbf16>, vector<196x64xbf16>, vector<64x64xf32> -> vector<64x64xf32>
    %cst_34 = arith.constant 0.000000e+00 : f32
    %19 = vector.broadcast %cst_34 : f32 to vector<64x64xf32>
    %20 = arith.maximumf %18, %19 : vector<64x64xf32>
    %21 = tpu.iota {dimensions = array<i32: 0>} : vector<64x1xi32>
    %c64_i32 = arith.constant 64 : i32
    %22 = vector.broadcast %c64_i32 : i32 to vector<64x1xi32>
    %23 = arith.cmpi slt, %21, %22 : vector<64x1xi32>
    %cst_35 = arith.constant 0.000000e+00 : f32
    %24 = vector.shape_cast %23 : vector<64x1xi1> to vector<64x1xi1>
    %25 = vector.broadcast %24 : vector<64x1xi1> to vector<64x64xi1>
    %26 = vector.broadcast %cst_35 : f32 to vector<64x64xf32>
    %27 = arith.select %25, %20, %26 : vector<64x64xi1>, vector<64x64xf32>
    %cst_36 = arith.constant dense<0.000000e+00> : vector<64xf32>
    %28 = vector.multi_reduction <add>, %27, %cst_36 [0] : vector<64x64xf32> to vector<64xf32>
    %29 = vector.shape_cast %28 : vector<64xf32> to vector<1x64xf32>
    %30 = arith.addf %1, %29 : vector<1x64xf32>
    %c0_37 = arith.constant 0 : index
    %c0_38 = arith.constant 0 : index
    %c0_39 = arith.constant 0 : index
    %31 = vector.load %arg3[%c0_37, %c0_38, %c0_39] : memref<1x1x64xf32, #tpu.memory_space<vmem>>, vector<1x1x64xf32>
    %32 = vector.shape_cast %31 : vector<1x1x64xf32> to vector<1x64xf32>
    %33 = vector.shape_cast %30 : vector<1x64xf32> to vector<1x1x64xf32>
    tpu.vector_store %arg3[%c0_37, %c0_38, %c0_39], %33 {strides = array<i32>} : memref<1x1x64xf32, #tpu.memory_space<vmem>>, vector<1x1x64xf32>,
    return
  }
  func.func @transform_0(%arg0: i32) -> (i32, i32, i32, i32, i32) {
    %c0_i32 = arith.constant 0 : i32
    %c0_i32_0 = arith.constant 0 : i32
    %c0_i32_1 = arith.constant 0 : i32
    %c0_i32_2 = arith.constant 0 : i32
    %c0_i32_3 = arith.constant 0 : i32
    return %arg0, %c0_i32, %c0_i32_0, %c0_i32_1, %c0_i32_2 : i32, i32, i32, i32, i32
  }
  func.func @transform_1(%arg0: i32) -> (i32, i32) {
    %c0_i32 = arith.constant 0 : i32
    %c0_i32_0 = arith.constant 0 : i32
    %c0_i32_1 = arith.constant 0 : i32
    return %c0_i32, %c0_i32_0 : i32, i32
  }
  func.func @transform_2(%arg0: i32) -> (i32, i32, i32) {
    %c0_i32 = arith.constant 0 : i32
    %c0_i32_0 = arith.constant 0 : i32
    %c0_i32_1 = arith.constant 0 : i32
    return %arg0, %c0_i32, %c0_i32_0 : i32, i32, i32
  }
}

</mosaic_0001>

<llo_original>
// kernel: protein_net_forward.1
$region0: #{protein_net_forward.1}
  #allocation0 [shape = 'u32[]', space=smem, size = 0x4, offset = 0x4, fixed_abs, tag = 'smem constant byte address 0x4 - core index']
  #allocation1 [shape = 'u32[72,128]{1,0:T(1,128)}', space=vmem, size = 0x9000, scoped, tag = 'internal scratch']
  %s0 = inlined_call_operand.vmem [shape: bf16[2,2,11,8,28], index: 0, kind: input, shape index: {}]
  %s1 = inlined_call_operand.vmem [shape: bf16[196,64], index: 1, kind: input, shape index: {}]
  %s2 = inlined_call_operand.vmem [shape: f32[2,1,64], index: 2, kind: output, shape index: {}]
  %s3 = sld [smem:[#allocation0]]
  $region41: #{protein_net_forward.1} parent=0
    _
  %s5 = ssub.s32 1, %s3
  %s6 = scalar_select 0, %s5, %s3
  loop: start=0, step=1, limit=4
  $region2: #{protein_net_forward.1} parent=0 // loop_pre_header
    _
  $region3: #{protein_net_forward.1} parent=0 // loop_header
    %s8 = sphi 0, %s12
    %p9 = scmp.ge.s32.totalorder %s8, 4
    %s18 = sphi 0, %s20
    %s21 = sphi 0, %s18
    %s22 = sphi 0, %s21
    %s38 = sphi 0, %s22
    %s42 = sphi 0, %s42
    %s44 = sphi 0, %s42
    %s45 = sphi 0, %s44
    %s59 = sphi 0, %s45
    %s65 = sphi 0, %s67
    %s68 = sphi 0, %s65
    %s69 = sphi 0, %s68
    %s85 = sphi 0, %s69
  $region4: #{protein_net_forward.1} parent=0 // loop_header_branch
    %11 = sbr.rel (%p9) target = $region8
  $region5: #{protein_net_forward.1} parent=0 // loop_body
    %s13 = ssub.s32 %s8, 1
    %s14 = ssub.s32 %s8, 2
    %s15 = sadd.s32 %s8, 1
    %s16 = ssub.s32 %s8, %s15
    %p17 = scmp.eq.s32.totalorder %s16, 0
    %s19 = sadd.s32 %s18, 1
    %s20 = scalar_select %p17, %s18, %s19
    %p23 = pneg %p17
    %p24 = scmp.eq.s32.totalorder %s8, 1
    %p25 = por %p23, %p24
    %p26 = scmp.ne.s32.totalorder %s18, %s21
    %p27 = scmp.eq.s32.totalorder %s8, 0
    %p28 = por %p26, %p27
    %p29 = scmp.ne.s32.totalorder %s18, %s21
    %p30 = scmp.eq.s32.totalorder %s13, 1
    %p31 = por %p29, %p30
    %p32 = scmp.ne.s32.totalorder %s21, %s22
    %p33 = scmp.eq.s32.totalorder %s13, 0
    %p34 = por %p32, %p33
    %p35 = scmp.ne.s32.totalorder %s21, %s22
    %p36 = scmp.eq.s32.totalorder %s14, 1
    %p37 = por %p35, %p36
    %p39 = scmp.ne.s32.totalorder %s22, %s38
    %p40 = scmp.eq.s32.totalorder %s14, 0
    %p41 = por %p39, %p40
    %s43 = sadd.s32 %s42, 1
    %p46 = scmp.eq.s32.totalorder %s8, 1
    %p47 = scmp.ne.s32.totalorder %s42, %s44
    %p48 = scmp.eq.s32.totalorder %s8, 0
    %p49 = por %p47, %p48
    %p50 = scmp.ne.s32.totalorder %s42, %s44
    %p51 = scmp.eq.s32.totalorder %s13, 1
    %p52 = por %p50, %p51
    %p53 = scmp.ne.s32.totalorder %s44, %s45
    %p54 = scmp.eq.s32.totalorder %s13, 0
    %p55 = por %p53, %p54
    %p56 = scmp.ne.s32.totalorder %s44, %s45
    %p57 = scmp.eq.s32.totalorder %s14, 1
    %p58 = por %p56, %p57
    %p60 = scmp.ne.s32.totalorder %s45, %s59
    %p61 = scmp.eq.s32.totalorder %s14, 0
    %p62 = por %p60, %p61
    %s63 = ssub.s32 %s8, %s15
    %p64 = scmp.eq.s32.totalorder %s63, 0
    %s66 = sadd.s32 %s65, 1
    %s67 = scalar_select %p64, %s65, %s66
    %p70 = pneg %p64
    %p71 = scmp.eq.s32.totalorder %s8, 1
    %p72 = por %p70, %p71
    %p73 = scmp.ne.s32.totalorder %s65, %s68
    %p74 = scmp.eq.s32.totalorder %s8, 0
    %p75 = por %p73, %p74
    %p76 = scmp.ne.s32.totalorder %s65, %s68
    %p77 = scmp.eq.s32.totalorder %s13, 1
    %p78 = por %p76, %p77
    %p79 = scmp.ne.s32.totalorder %s68, %s69
    %p80 = scmp.eq.s32.totalorder %s13, 0
    %p81 = por %p79, %p80
    %p82 = scmp.ne.s32.totalorder %s68, %s69
    %p83 = scmp.eq.s32.totalorder %s14, 1
    %p84 = por %p82, %p83
    %p86 = scmp.ne.s32.totalorder %s69, %s85
    %p87 = scmp.eq.s32.totalorder %s14, 0
    %p88 = por %p86, %p87
    %p89 = scmp.le.s32.totalorder 1, %s8
    %p90 = scmp.lt.s32.totalorder %s8, 3
    %p91 = pnand %p89, %p90
    %p92 = pneg %p91
    // Predicated region
    $region9: #{protein_net_forward.1} parent=5 // pred_check
      _
    $region10: #{protein_net_forward.1} parent=5 // pred_check_branch
      %94 = sbr.rel (%p91) target = $region12
    $region11: #{protein_net_forward.1} parent=5 // pred_region
      %s95 = ssub.s32 %s8, 1
      // Predicated region
      $region13: #{protein_net_forward.1} parent=11 // pred_check
        %p96 = pneg %p55
      $region14: #{protein_net_forward.1} parent=11 // pred_check_branch
        %98 = sbr.rel (%p96) target = $region16
      $region15: #{protein_net_forward.1} parent=11 // pred_region
        _
      $region16: #{protein_net_forward.1} parent=11 // pred_fallthru
        _
    $region12: #{protein_net_forward.1} parent=5 // pred_fallthru
      _
    %p99 = scmp.lt.s32.totalorder %s8, 2
    // Predicated region
    $region17: #{protein_net_forward.1} parent=5 // pred_check
      %p100 = pneg %p99
    $region18: #{protein_net_forward.1} parent=5 // pred_check_branch
      %102 = sbr.rel (%p100) target = $region20
    $region19: #{protein_net_forward.1} parent=5 // pred_region
      // Predicated region
      $region21: #{protein_net_forward.1} parent=19 // pred_check
        %p103 = pneg %p28
      $region22: #{protein_net_forward.1} parent=19 // pred_check_branch
        %105 = sbr.rel (%p103) target = $region24
      $region23: #{protein_net_forward.1} parent=19 // pred_region
        %p106 = scmp.lt.s32.totalorder %s8, 1
        %s107 = scalar_select %p106, %s8, 1
        %s108 = smul.addr %s107, 22
        %s109 = smul.addr %s108, 4
        %s110 = scalar_lea.vmem %s0, %s109
      $region24: #{protein_net_forward.1} parent=19 // pred_fallthru
        _
    $region20: #{protein_net_forward.1} parent=5 // pred_fallthru
      _
    %p111 = scmp.le.s32.totalorder 1, %s8
    %p112 = scmp.lt.s32.totalorder %s8, 3
    %p113 = pnand %p111, %p112
    %p114 = pneg %p113
    // Predicated region
    $region25: #{protein_net_forward.1} parent=5 // pred_check
      _
    $region26: #{protein_net_forward.1} parent=5 // pred_check_branch
      %116 = sbr.rel (%p113) target = $region28
    $region27: #{protein_net_forward.1} parent=5 // pred_region
      %s117 = ssub.s32 %s8, 1
      %p118 = scmp.lt.s32.totalorder %s13, 1
      %s119 = scalar_select %p118, %s13, 1
      %s120 = smul.addr %s119, 22
      %s121 = smul.addr %s120, 4
      %s122 = scalar_lea.vmem %s0, %s121
      %p123 = pneg %p34
      %p124 = pneg %p31
      %p125 = pneg %p55
      %p126 = pneg %p52
      %p127 = pneg %p81
      %p128 = pneg %p78
      %p129 = scmp.lt.s32.totalorder %s13, 1
      %s130 = scalar_select %p129, %s13, 1
      %s131 = scalar_lea.vmem %s2, %s130
      %p132 = scmp.lt.s32.totalorder %s13, 1
      %s133 = scalar_select %p132, %s13, 1
      %s134 = smul.addr %s133, 22
      %s135 = smul.addr %s134, 4
      %s136 = scalar_lea.vmem %s0, %s135
      %p137 = scmp.lt.s32.totalorder %s13, 1
      %s138 = scalar_select %p137, %s13, 1
      %s139 = scalar_lea.vmem %s2, %s138
      %v141 = vld [vmem:[%s1] sm:$0xf]
      %v142 = vld [vmem:[%s1 + $0x4] sm:$0xf]
      %v143 = vld [vmem:[%s1 + $0x8] sm:$0xf]
      %v144 = vld [vmem:[%s1 + $0xc] sm:$0xf]
      %v145 = vld [vmem:[%s1 + $0x10] sm:$0xf]
      %v146 = vld [vmem:[%s1 + $0x14] sm:$0xf]
      %v147 = vld [vmem:[%s1 + $0x18] sm:$0xf]
      %v148 = vld [vmem:[%s1 + $0x1c] sm:$0xf]
      %v149 = vld [vmem:[%s1 + $0x20] sm:$0xf]
      %v150 = vld [vmem:[%s1 + $0x24] sm:$0xf]
      %v151 = vld [vmem:[%s1 + $0x28] sm:$0xf]
      %v152 = vld [vmem:[%s1 + $0x2c] sm:$0xf]
      %v153 = vld [vmem:[%s1 + $0x30] sm:$0xf]
      %v154 = vld [vmem:[%s1 + $0x34] sm:$0xf]
      %v155 = vld [vmem:[%s1 + $0x38] sm:$0xf]
      %v156 = vld [vmem:[%s1 + $0x3c] sm:$0xf]
      %v157 = vld [vmem:[%s1 + $0x40] sm:$0xf]
      %v158 = vld [vmem:[%s1 + $0x44] sm:$0xf]
      %v159 = vld [vmem:[%s1 + $0x48] sm:$0xf]
      %v160 = vld [vmem:[%s1 + $0x4c] sm:$0xf]
      %v161 = vld [vmem:[%s1 + $0x50] sm:$0xf]
      %v162 = vld [vmem:[%s1 + $0x54] sm:$0xf]
      %v163 = vld [vmem:[%s1 + $0x58] sm:$0xf]
      %v164 = vld [vmem:[%s1 + $0x5c] sm:$0xf]
      %v165 = vld [vmem:[%s1 + $0x60] sm:$0x3]
      %v166 = vld [vmem:[%s136] sm:$0xf]
      %v167 = vld [vmem:[%s136 + $0x4] sm:$0xf]
      %v168 = vld [vmem:[%s136 + $0x8] sm:$0xf]
      %v169 = vld [vmem:[%s136 + $0xc] sm:$0xf]
      %v170 = vld [vmem:[%s136 + $0x10] sm:$0xf]
      %v171 = vld [vmem:[%s136 + $0x14] sm:$0xf]
      %v172 = vld [vmem:[%s136 + $0x18] sm:$0xf]
      %v173 = vld [vmem:[%s136 + $0x1c] sm:$0xf]
      %s174 = scalar_lea.vmem %s136, 44
      %v175 = vld [vmem:[%s174] sm:$0xf]
      %v176 = vld [vmem:[%s174 + $0x4] sm:$0xf]
      %v177 = vld [vmem:[%s174 + $0x8] sm:$0xf]
      %v178 = vld [vmem:[%s174 + $0xc] sm:$0xf]
      %v179 = vld [vmem:[%s174 + $0x10] sm:$0xf]
      %v180 = vld [vmem:[%s174 + $0x14] sm:$0xf]
      %v181 = vld [vmem:[%s174 + $0x18] sm:$0xf]
      %v182 = vld [vmem:[%s174 + $0x1c] sm:$0xf]
      %s183 = scalar_lea.vmem %s136, 4
      %v184 = vld [vmem:[%s183] sm:$0xf]
      %v185 = vld [vmem:[%s183 + $0x4] sm:$0xf]
      %v186 = vld [vmem:[%s183 + $0x8] sm:$0xf]
      %v187 = vld [vmem:[%s183 + $0xc] sm:$0xf]
      %v188 = vld [vmem:[%s183 + $0x10] sm:$0xf]
      %v189 = vld [vmem:[%s183 + $0x14] sm:$0xf]
      %v190 = vld [vmem:[%s183 + $0x18] sm:$0xf]
      %v191 = vld [vmem:[%s183 + $0x1c] sm:$0xf]
      %s192 = scalar_lea.vmem %s136, 48
      %v193 = vld [vmem:[%s192] sm:$0xf]
      %v194 = vld [vmem:[%s192 + $0x4] sm:$0xf]
      %v195 = vld [vmem:[%s192 + $0x8] sm:$0xf]
      %v196 = vld [vmem:[%s192 + $0xc] sm:$0xf]
      %v197 = vld [vmem:[%s192 + $0x10] sm:$0xf]
      %v198 = vld [vmem:[%s192 + $0x14] sm:$0xf]
      %v199 = vld [vmem:[%s192 + $0x18] sm:$0xf]
      %v200 = vld [vmem:[%s192 + $0x1c] sm:$0xf]
      %s201 = scalar_lea.vmem %s136, 8
      %v202 = vld [vmem:[%s201] sm:$0xf]
      %v203 = vld [vmem:[%s201 + $0x4] sm:$0xf]
      %v204 = vld [vmem:[%s201 + $0x8] sm:$0xf]
      %v205 = vld [vmem:[%s201 + $0xc] sm:$0xf]
      %v206 = vld [vmem:[%s201 + $0x10] sm:$0xf]
      %v207 = vld [vmem:[%s201 + $0x14] sm:$0xf]
      %v208 = vld [vmem:[%s201 + $0x18] sm:$0xf]
      %v209 = vld [vmem:[%s201 + $0x1c] sm:$0xf]
      %s210 = scalar_lea.vmem %s136, 52
      %v211 = vld [vmem:[%s210] sm:$0xf]
      %v212 = vld [vmem:[%s210 + $0x4] sm:$0xf]
      %v213 = vld [vmem:[%s210 + $0x8] sm:$0xf]
      %v214 = vld [vmem:[%s210 + $0xc] sm:$0xf]
      %v215 = vld [vmem:[%s210 + $0x10] sm:$0xf]
      %v216 = vld [vmem:[%s210 + $0x14] sm:$0xf]
      %v217 = vld [vmem:[%s210 + $0x18] sm:$0xf]
      %v218 = vld [vmem:[%s210 + $0x1c] sm:$0xf]
      %s219 = scalar_lea.vmem %s136, 12
      %v220 = vld [vmem:[%s219] sm:$0xf]
      %v221 = vld [vmem:[%s219 + $0x4] sm:$0xf]
      %v222 = vld [vmem:[%s219 + $0x8] sm:$0xf]
      %v223 = vld [vmem:[%s219 + $0xc] sm:$0xf]
      %v224 = vld [vmem:[%s219 + $0x10] sm:$0xf]
      %v225 = vld [vmem:[%s219 + $0x14] sm:$0xf]
      %v226 = vld [vmem:[%s219 + $0x18] sm:$0xf]
      %v227 = vld [vmem:[%s219 + $0x1c] sm:$0xf]
      %v236 = vunpack.c.l.b16 %v175
      %v237 = vunpack.c.l.b16 %v176
      %v238 = vunpack.c.l.b16 %v177
      %v239 = vunpack.c.l.b16 %v178
      %v240 = vunpack.c.l.b16 %v179
      %v241 = vunpack.c.l.b16 %v180
      %v242 = vunpack.c.l.b16 %v181
      %v243 = vunpack.c.l.b16 %v182
      %v244 = vpack.c.b16 %v236, %v236
      %v245 = vpack.c.b16 %v237, %v237
      %v246 = vpack.c.b16 %v238, %v238
      %v247 = vpack.c.b16 %v239, %v239
      %v248 = vpack.c.b16 %v240, %v240
      %v249 = vpack.c.b16 %v241, %v241
      %v250 = vpack.c.b16 %v242, %v242
      %v251 = vpack.c.b16 %v243, %v243
      %252 = vrot.lane.b32.xlu0 %v244, 28
      %v253 = vpop.permute.xlu0 %252
      %254 = vrot.lane.b32.xlu0 %v245, 28
      %v255 = vpop.permute.xlu0 %254
      %256 = vrot.lane.b32.xlu0 %v246, 28
      %v257 = vpop.permute.xlu0 %256
      %258 = vrot.lane.b32.xlu0 %v247, 28
      %v259 = vpop.permute.xlu0 %258
      %260 = vrot.lane.b32.xlu0 %v248, 28
      %v261 = vpop.permute.xlu0 %260
      %262 = vrot.lane.b32.xlu0 %v249, 28
      %v263 = vpop.permute.xlu0 %262
      %264 = vrot.lane.b32.xlu0 %v250, 28
      %v265 = vpop.permute.xlu0 %264
      %266 = vrot.lane.b32.xlu0 %v251, 28
      %v267 = vpop.permute.xlu0 %266
      %v276 = vunpack.c.l.b16 %v184
      %v277 = vunpack.c.l.b16 %v185
      %v278 = vunpack.c.l.b16 %v186
      %v279 = vunpack.c.l.b16 %v187
      %v280 = vunpack.c.l.b16 %v188
      %v281 = vunpack.c.l.b16 %v189
      %v282 = vunpack.c.l.b16 %v190
      %v283 = vunpack.c.l.b16 %v191
      %v284 = vpack.c.b16 %v276, %v276
      %v285 = vpack.c.b16 %v277, %v277
      %v286 = vpack.c.b16 %v278, %v278
      %v287 = vpack.c.b16 %v279, %v279
      %v288 = vpack.c.b16 %v280, %v280
      %v289 = vpack.c.b16 %v281, %v281
      %v290 = vpack.c.b16 %v282, %v282
      %v291 = vpack.c.b16 %v283, %v283
      %292 = vrot.lane.b32.xlu0 %v284, 56
      %v293 = vpop.permute.xlu0 %292
      %294 = vrot.lane.b32.xlu0 %v285, 56
      %v295 = vpop.permute.xlu0 %294
      %296 = vrot.lane.b32.xlu0 %v286, 56
      %v297 = vpop.permute.xlu0 %296
      %298 = vrot.lane.b32.xlu0 %v287, 56
      %v299 = vpop.permute.xlu0 %298
      %300 = vrot.lane.b32.xlu0 %v288, 56
      %v301 = vpop.permute.xlu0 %300
      %302 = vrot.lane.b32.xlu0 %v289, 56
      %v303 = vpop.permute.xlu0 %302
      %304 = vrot.lane.b32.xlu0 %v290, 56
      %v305 = vpop.permute.xlu0 %304
      %306 = vrot.lane.b32.xlu0 %v291, 56
      %v307 = vpop.permute.xlu0 %306
      %v316 = vunpack.c.l.b16 %v193
      %v317 = vunpack.c.l.b16 %v194
      %v318 = vunpack.c.l.b16 %v195
      %v319 = vunpack.c.l.b16 %v196
      %v320 = vunpack.c.l.b16 %v197
      %v321 = vunpack.c.l.b16 %v198
      %v322 = vunpack.c.l.b16 %v199
      %v323 = vunpack.c.l.b16 %v200
      %v324 = vpack.c.b16 %v316, %v316
      %v325 = vpack.c.b16 %v317, %v317
      %v326 = vpack.c.b16 %v318, %v318
      %v327 = vpack.c.b16 %v319, %v319
      %v328 = vpack.c.b16 %v320, %v320
      %v329 = vpack.c.b16 %v321, %v321
      %v330 = vpack.c.b16 %v322, %v322
      %v331 = vpack.c.b16 %v323, %v323
      %332 = vrot.lane.b32.xlu0 %v324, 84
      %v333 = vpop.permute.xlu0 %332
      %334 = vrot.lane.b32.xlu0 %v325, 84
      %v335 = vpop.permute.xlu0 %334
      %336 = vrot.lane.b32.xlu0 %v326, 84
      %v337 = vpop.permute.xlu0 %336
      %338 = vrot.lane.b32.xlu0 %v327, 84
      %v339 = vpop.permute.xlu0 %338
      %340 = vrot.lane.b32.xlu0 %v328, 84
      %v341 = vpop.permute.xlu0 %340
      %342 = vrot.lane.b32.xlu0 %v329, 84
      %v343 = vpop.permute.xlu0 %342
      %344 = vrot.lane.b32.xlu0 %v330, 84
      %v345 = vpop.permute.xlu0 %344
      %346 = vrot.lane.b32.xlu0 %v331, 84
      %v347 = vpop.permute.xlu0 %346
      %v356 = vunpack.c.l.b16 %v202
      %v357 = vunpack.c.l.b16 %v203
      %v358 = vunpack.c.l.b16 %v204
      %v359 = vunpack.c.l.b16 %v205
      %v360 = vunpack.c.l.b16 %v206
      %v361 = vunpack.c.l.b16 %v207
      %v362 = vunpack.c.l.b16 %v208
      %v363 = vunpack.c.l.b16 %v209
      %v364 = vpack.c.b16 %v356, %v356
      %v365 = vpack.c.b16 %v357, %v357
      %v366 = vpack.c.b16 %v358, %v358
      %v367 = vpack.c.b16 %v359, %v359
      %v368 = vpack.c.b16 %v360, %v360
      %v369 = vpack.c.b16 %v361, %v361
      %v370 = vpack.c.b16 %v362, %v362
      %v371 = vpack.c.b16 %v363, %v363
      %372 = vrot.lane.b32.xlu0 %v364, 112
      %v373 = vpop.permute.xlu0 %372
      %374 = vrot.lane.b32.xlu0 %v365, 112
      %v375 = vpop.permute.xlu0 %374
      %376 = vrot.lane.b32.xlu0 %v366, 112
      %v377 = vpop.permute.xlu0 %376
      %378 = vrot.lane.b32.xlu0 %v367, 112
      %v379 = vpop.permute.xlu0 %378
      %380 = vrot.lane.b32.xlu0 %v368, 112
      %v381 = vpop.permute.xlu0 %380
      %382 = vrot.lane.b32.xlu0 %v369, 112
      %v383 = vpop.permute.xlu0 %382
      %384 = vrot.lane.b32.xlu0 %v370, 112
      %v385 = vpop.permute.xlu0 %384
      %386 = vrot.lane.b32.xlu0 %v371, 112
      %v387 = vpop.permute.xlu0 %386
      %v396 = vunpack.c.l.b16 %v211
      %v397 = vunpack.c.l.b16 %v212
      %v398 = vunpack.c.l.b16 %v213
      %v399 = vunpack.c.l.b16 %v214
      %v400 = vunpack.c.l.b16 %v215
      %v401 = vunpack.c.l.b16 %v216
      %v402 = vunpack.c.l.b16 %v217
      %v403 = vunpack.c.l.b16 %v218
      %v404 = vpack.c.b16 %v396, %v396
      %v405 = vpack.c.b16 %v397, %v397
      %v406 = vpack.c.b16 %v398, %v398
      %v407 = vpack.c.b16 %v399, %v399
      %v408 = vpack.c.b16 %v400, %v400
      %v409 = vpack.c.b16 %v401, %v401
      %v410 = vpack.c.b16 %v402, %v402
      %v411 = vpack.c.b16 %v403, %v403
      %412 = vrot.lane.b32.xlu0 %v404, 12
      %v413 = vpop.permute.xlu0 %412
      %414 = vrot.lane.b32.xlu0 %v405, 12
      %v415 = vpop.permute.xlu0 %414
      %416 = vrot.lane.b32.xlu0 %v406, 12
      %v417 = vpop.permute.xlu0 %416
      %418 = vrot.lane.b32.xlu0 %v407, 12
      %v419 = vpop.permute.xlu0 %418
      %420 = vrot.lane.b32.xlu0 %v408, 12
      %v421 = vpop.permute.xlu0 %420
      %422 = vrot.lane.b32.xlu0 %v409, 12
      %v423 = vpop.permute.xlu0 %422
      %424 = vrot.lane.b32.xlu0 %v410, 12
      %v425 = vpop.permute.xlu0 %424
      %426 = vrot.lane.b32.xlu0 %v411, 12
      %v427 = vpop.permute.xlu0 %426
      %v436 = vunpack.c.l.b16 %v220
      %v437 = vunpack.c.l.b16 %v221
      %v438 = vunpack.c.l.b16 %v222
      %v439 = vunpack.c.l.b16 %v223
      %v440 = vunpack.c.l.b16 %v224
      %v441 = vunpack.c.l.b16 %v225
      %v442 = vunpack.c.l.b16 %v226
      %v443 = vunpack.c.l.b16 %v227
      %v444 = vpack.c.b16 %v436, %v436
      %v445 = vpack.c.b16 %v437, %v437
      %v446 = vpack.c.b16 %v438, %v438
      %v447 = vpack.c.b16 %v439, %v439
      %v448 = vpack.c.b16 %v440, %v440
      %v449 = vpack.c.b16 %v441, %v441
      %v450 = vpack.c.b16 %v442, %v442
      %v451 = vpack.c.b16 %v443, %v443
      %452 = vrot.lane.b32.xlu0 %v444, 40
      %v453 = vpop.permute.xlu0 %452
      %454 = vrot.lane.b32.xlu0 %v445, 40
      %v455 = vpop.permute.xlu0 %454
      %456 = vrot.lane.b32.xlu0 %v446, 40
      %v457 = vpop.permute.xlu0 %456
      %458 = vrot.lane.b32.xlu0 %v447, 40
      %v459 = vpop.permute.xlu0 %458
      %460 = vrot.lane.b32.xlu0 %v448, 40
      %v461 = vpop.permute.xlu0 %460
      %462 = vrot.lane.b32.xlu0 %v449, 40
      %v463 = vpop.permute.xlu0 %462
      %464 = vrot.lane.b32.xlu0 %v450, 40
      %v465 = vpop.permute.xlu0 %464
      %466 = vrot.lane.b32.xlu0 %v451, 40
      %v467 = vpop.permute.xlu0 %466
      %vm468 = vcmask 228352
      %v471 = vsel %vm468, %v166, %v253
      %v474 = vsel %vm468, %v167, %v255
      %v477 = vsel %vm468, %v168, %v257
      %v480 = vsel %vm468, %v169, %v259
      %v483 = vsel %vm468, %v170, %v261
      %v486 = vsel %vm468, %v171, %v263
      %v489 = vsel %vm468, %v172, %v265
      %v492 = vsel %vm468, %v173, %v267
      %vm493 = vcmask 457728
      %v495 = vsel %vm493, %v471, %v293
      %v497 = vsel %vm493, %v474, %v295
      %v499 = vsel %vm493, %v477, %v297
      %v501 = vsel %vm493, %v480, %v299
      %v503 = vsel %vm493, %v483, %v301
      %v505 = vsel %vm493, %v486, %v303
      %v507 = vsel %vm493, %v489, %v305
      %v509 = vsel %vm493, %v492, %v307
      %vm510 = vcmask 687104
      %v512 = vsel %vm510, %v495, %v333
      %v514 = vsel %vm510, %v497, %v335
      %v516 = vsel %vm510, %v499, %v337
      %v518 = vsel %vm510, %v501, %v339
      %v520 = vsel %vm510, %v503, %v341
      %v522 = vsel %vm510, %v505, %v343
      %v524 = vsel %vm510, %v507, %v345
      %v526 = vsel %vm510, %v509, %v347
      %vm527 = vcmask 916480
      %v529 = vsel %vm527, %v512, %v373
      %v531 = vsel %vm527, %v514, %v375
      %v533 = vsel %vm527, %v516, %v377
      %v535 = vsel %vm527, %v518, %v379
      %v537 = vsel %vm527, %v520, %v381
      %v539 = vsel %vm527, %v522, %v383
      %v541 = vsel %vm527, %v524, %v385
      %v543 = vsel %vm527, %v526, %v387
      %vm544 = vcmask 97280
      %v546 = vsel %vm544, %v373, %v413
      %v548 = vsel %vm544, %v375, %v415
      %v550 = vsel %vm544, %v377, %v417
      %v552 = vsel %vm544, %v379, %v419
      %v554 = vsel %vm544, %v381, %v421
      %v556 = vsel %vm544, %v383, %v423
      %v558 = vsel %vm544, %v385, %v425
      %v560 = vsel %vm544, %v387, %v427
      %vm561 = vcmask 326656
      %v563 = vsel %vm561, %v546, %v453
      %v565 = vsel %vm561, %v548, %v455
      %v567 = vsel %vm561, %v550, %v457
      %v569 = vsel %vm561, %v552, %v459
      %v571 = vsel %vm561, %v554, %v461
      %v573 = vsel %vm561, %v556, %v463
      %v575 = vsel %vm561, %v558, %v465
      %v577 = vsel %vm561, %v560, %v467
      %v594 = vunpack.c.l.b16 %v529
      %v595 = vunpack.c.l.b16 %v563
      %v596 = vunpack.c.l.b16 %v531
      %v597 = vunpack.c.l.b16 %v565
      %v598 = vunpack.c.l.b16 %v533
      %v599 = vunpack.c.l.b16 %v567
      %v600 = vunpack.c.l.b16 %v535
      %v601 = vunpack.c.l.b16 %v569
      %v602 = vunpack.c.l.b16 %v537
      %v603 = vunpack.c.l.b16 %v571
      %v604 = vunpack.c.l.b16 %v539
      %v605 = vunpack.c.l.b16 %v573
      %v606 = vunpack.c.l.b16 %v541
      %v607 = vunpack.c.l.b16 %v575
      %v608 = vunpack.c.l.b16 %v543
      %v609 = vunpack.c.l.b16 %v577
      %v610 = vpack.c.b16 %v596, %v594
      %v611 = vpack.c.b16 %v597, %v595
      %v612 = vpack.c.b16 %v600, %v598
      %v613 = vpack.c.b16 %v601, %v599
      %v614 = vpack.c.b16 %v604, %v602
      %v615 = vpack.c.b16 %v605, %v603
      %v616 = vpack.c.b16 %v608, %v606
      %v617 = vpack.c.b16 %v609, %v607
      %v647 = vunpack.c.l.b16 %v141
      %v648 = vunpack.c.l.b16 %v142
      %v649 = vunpack.c.l.b16 %v143
      %v650 = vunpack.c.l.b16 %v144
      %v651 = vunpack.c.l.b16 %v145
      %v652 = vunpack.c.l.b16 %v146
      %v653 = vunpack.c.l.b16 %v147
      %v654 = vunpack.c.l.b16 %v148
      %v655 = vunpack.c.l.b16 %v149
      %v656 = vunpack.c.l.b16 %v150
      %v657 = vunpack.c.l.b16 %v151
      %v658 = vunpack.c.l.b16 %v152
      %v659 = vunpack.c.l.b16 %v153
      %v660 = vunpack.c.l.b16 %v154
      %v661 = vunpack.c.l.b16 %v155
      %v662 = vunpack.c.l.b16 %v156
      %v663 = vunpack.c.l.b16 %v157
      %v664 = vunpack.c.l.b16 %v158
      %v665 = vunpack.c.l.b16 %v159
      %v666 = vunpack.c.l.b16 %v160
      %v667 = vunpack.c.l.b16 %v161
      %v668 = vunpack.c.l.b16 %v162
      %v669 = vunpack.c.l.b16 %v163
      %v670 = vunpack.c.l.b16 %v164
      %v671 = vunpack.c.l.b16 %v165
      %v672 = vpack.c.b16 %v648, %v647
      %v673 = vpack.c.b16 %v650, %v649
      %v674 = vpack.c.b16 %v652, %v651
      %v675 = vpack.c.b16 %v654, %v653
      %v676 = vpack.c.b16 %v656, %v655
      %v677 = vpack.c.b16 %v658, %v657
      %v678 = vpack.c.b16 %v660, %v659
      %v679 = vpack.c.b16 %v662, %v661
      %v680 = vpack.c.b16 %v664, %v663
      %v681 = vpack.c.b16 %v666, %v665
      %v682 = vpack.c.b16 %v668, %v667
      %v683 = vpack.c.b16 %v670, %v669
      %v684 = vpack.c.b16 %v671, %v671
      %vm697 = vcmask 556032
      %v699 = vsel %vm697, %v611, 0
      %v702 = vsel %vm697, %v613, 0
      %v705 = vsel %vm697, %v615, 0
      %v708 = vsel %vm697, %v617, 0
      %vm710 = vcmask 1041408
      %v712 = vsel %vm710, %v684, 0
      %714 = vmatpush.bf16.msra.mxu0 %v679
      %715 = vmatpush.bf16.msra.mxu0 %v678
      %716 = vmatpush.bf16.msra.mxu0 %v677
      %717 = vmatpush.bf16.msra.mxu0 %v676
      %718 = vmatpush.bf16.msra.mxu0 %v675
      %719 = vmatpush.bf16.msra.mxu0 %v674
      %720 = vmatpush.bf16.msra.mxu0 %v673
      %721 = vmatpush.bf16.msra.mxu0 %v672
      %722 = vmatmul.bf16.gmra.mxu0 %v610
      %v723 = vpop.f32.mrf.mxu0
      %v724 = vadd.f32 0.0, %v723
      %v725 = vpop.f32.mrf.mxu0
      %v726 = vadd.f32 0.0, %v725
      %727 = vmatmul.bf16.gmra.mxu0 %v612
      %v728 = vpop.f32.mrf.mxu0
      %v729 = vadd.f32 0.0, %v728
      %v730 = vpop.f32.mrf.mxu0
      %v731 = vadd.f32 0.0, %v730
      %732 = vmatmul.bf16.gmra.mxu0 %v614
      %v733 = vpop.f32.mrf.mxu0
      %v734 = vadd.f32 0.0, %v733
      %v735 = vpop.f32.mrf.mxu0
      %v736 = vadd.f32 0.0, %v735
      %737 = vmatmul.bf16.gmra.mxu0 %v616
      %v738 = vpop.f32.mrf.mxu0
      %v739 = vadd.f32 0.0, %v738
      %v740 = vpop.f32.mrf.mxu0
      %v741 = vadd.f32 0.0, %v740
      %742 = vdwg.mxu0
      %743 = vmatpush.bf16.msra.mxu0 0
      %744 = vmatpush.bf16.msra.mxu0 0
      %745 = vmatpush.bf16.msra.mxu0 0
      %746 = vmatpush.bf16.msra.mxu0 %v712
      %747 = vmatpush.bf16.msra.mxu0 %v683
      %748 = vmatpush.bf16.msra.mxu0 %v682
      %749 = vmatpush.bf16.msra.mxu0 %v681
      %750 = vmatpush.bf16.msra.mxu0 %v680
      %751 = vmatmul.bf16.gmra.mxu0 %v699
      %v752 = vpop.f32.mrf.mxu0
      %v753 = vadd.f32 %v724, %v752
      %v754 = vpop.f32.mrf.mxu0
      %v755 = vadd.f32 %v726, %v754
      %756 = vmatmul.bf16.gmra.mxu0 %v702
      %v757 = vpop.f32.mrf.mxu0
      %v758 = vadd.f32 %v729, %v757
      %v759 = vpop.f32.mrf.mxu0
      %v760 = vadd.f32 %v731, %v759
      %761 = vmatmul.bf16.gmra.mxu0 %v705
      %v762 = vpop.f32.mrf.mxu0
      %v763 = vadd.f32 %v734, %v762
      %v764 = vpop.f32.mrf.mxu0
      %v765 = vadd.f32 %v736, %v764
      %766 = vmatmul.bf16.gmra.mxu0 %v708
      %v767 = vpop.f32.mrf.mxu0
      %v768 = vadd.f32 %v739, %v767
      %v769 = vpop.f32.mrf.mxu0
      %v770 = vadd.f32 %v741, %v769
      %771 = vdwg.mxu0
      %v772 = vmax.f32 %v753, 0.0
      %v773 = vmax.f32 %v755, 0.0
      %v774 = vmax.f32 %v758, 0.0
      %v775 = vmax.f32 %v760, 0.0
      %v776 = vmax.f32 %v763, 0.0
      %v777 = vmax.f32 %v765, 0.0
      %v778 = vmax.f32 %v768, 0.0
      %v779 = vmax.f32 %v770, 0.0
      %v780 = vlaneseq
      %v781 = vshrl.u32 %v780, 7
      %v782 = vadd.s32 %v781, 8
      %v783 = vadd.s32 %v781, 16
      %v784 = vadd.s32 %v781, 24
      %v785 = vadd.s32 %v781, 32
      %v786 = vadd.s32 %v781, 40
      %v787 = vadd.s32 %v781, 48
      %v788 = vadd.s32 %v781, 56
      %vm789 = vcmp.lt.s32.totalorder %v781, 64
      %vm790 = vcmp.lt.s32.totalorder %v782, 64
      %vm791 = vcmp.lt.s32.totalorder %v783, 64
      %vm792 = vcmp.lt.s32.totalorder %v784, 64
      %vm793 = vcmp.lt.s32.totalorder %v785, 64
      %vm794 = vcmp.lt.s32.totalorder %v786, 64
      %vm795 = vcmp.lt.s32.totalorder %v787, 64
      %vm796 = vcmp.lt.s32.totalorder %v788, 64
      %v797 = vsel %vm789, 1, 0
      %v798 = vsel %vm790, 1, 0
      %v799 = vsel %vm791, 1, 0
      %v800 = vsel %vm792, 1, 0
      %v801 = vsel %vm793, 1, 0
      %v802 = vsel %vm794, 1, 0
      %v803 = vsel %vm795, 1, 0
      %v804 = vsel %vm796, 1, 0
      %vm805 = vcmp.eq.s32.totalorder %v797, 1
      %vm806 = vcmp.eq.s32.totalorder %v798, 1
      %vm807 = vcmp.eq.s32.totalorder %v799, 1
      %vm808 = vcmp.eq.s32.totalorder %v800, 1
      %vm809 = vcmp.eq.s32.totalorder %v801, 1
      %vm810 = vcmp.eq.s32.totalorder %v802, 1
      %vm811 = vcmp.eq.s32.totalorder %v803, 1
      %vm812 = vcmp.eq.s32.totalorder %v804, 1
      %v813 = vsel %vm805, %v772, 0.0
      %v814 = vsel %vm806, %v773, 0.0
      %v815 = vsel %vm807, %v774, 0.0
      %v816 = vsel %vm808, %v775, 0.0
      %v817 = vsel %vm809, %v776, 0.0
      %v818 = vsel %vm810, %v777, 0.0
      %v819 = vsel %vm811, %v778, 0.0
      %v820 = vsel %vm812, %v779, 0.0
      %vm821 = vcmask 523264
      %v822 = vsel %vm821, %v813, 0.0
      %v823 = vsel %vm821, %v814, 0.0
      %v824 = vadd.f32 %v822, %v823
      %v825 = vsel %vm821, %v815, 0.0
      %v826 = vadd.f32 %v824, %v825
      %v827 = vsel %vm821, %v816, 0.0
      %v828 = vadd.f32 %v826, %v827
      %v829 = vsel %vm821, %v817, 0.0
      %v830 = vadd.f32 %v828, %v829
      %v831 = vsel %vm821, %v818, 0.0
      %v832 = vadd.f32 %v830, %v831
      %v833 = vsel %vm821, %v819, 0.0
      %v834 = vadd.f32 %v832, %v833
      %v835 = vsel %vm821, %v820, 0.0
      %v836 = vadd.f32 %v834, %v835
      %v837 = vrot.slane %v836, 4
      %v838 = vadd.f32 %v836, %v837
      %v839 = vrot.slane %v838, 2
      %v840 = vadd.f32 %v838, %v839
      %v841 = vrot.slane %v840, 1
      %v842 = vadd.f32 %v840, %v841
      %v843 = vadd.f32 %v842, 0.0
      %vm844 = vcmask 516096
      %845 = vst.msk [vmem:[%s139] sm:$0x1] %vm844, %v843
      %p846 = scmp.lt.s32.totalorder %s13, 1
      %s847 = scalar_select %p846, %s13, 1
      %s848 = scalar_lea.vmem %s2, %s847
      // Predicated region
      $region29: #{protein_net_forward.1} parent=27 // pred_check
        %p849 = pneg %p78
      $region30: #{protein_net_forward.1} parent=27 // pred_check_branch
        %851 = sbr.rel (%p849) target = $region32
      $region31: #{protein_net_forward.1} parent=27 // pred_region
        _
      $region32: #{protein_net_forward.1} parent=27 // pred_fallthru
        _
    $region28: #{protein_net_forward.1} parent=5 // pred_fallthru
      _
    %p852 = scmp.le.s32.totalorder 2, %s8
    // Predicated region
    $region33: #{protein_net_forward.1} parent=5 // pred_check
      %p853 = pneg %p852
    $region34: #{protein_net_forward.1} parent=5 // pred_check_branch
      %855 = sbr.rel (%p853) target = $region36
    $region35: #{protein_net_forward.1} parent=5 // pred_region
      %s856 = ssub.s32 %s8, 2
      // Predicated region
      $region37: #{protein_net_forward.1} parent=35 // pred_check
        %p857 = pneg %p84
      $region38: #{protein_net_forward.1} parent=35 // pred_check_branch
        %859 = sbr.rel (%p857) target = $region40
      $region39: #{protein_net_forward.1} parent=35 // pred_region
        %p860 = scmp.lt.s32.totalorder %s14, 1
        %s861 = scalar_select %p860, %s14, 1
        %s862 = scalar_lea.vmem %s2, %s861
      $region40: #{protein_net_forward.1} parent=35 // pred_fallthru
        _
    $region36: #{protein_net_forward.1} parent=5 // pred_fallthru
      _
  $region6: #{protein_net_forward.1} parent=0 // loop_footer
    %s12 = sadd.s32 1, %s8
  $region7: #{protein_net_forward.1} parent=0 // loop_footer_branch
    %7 = sbr.rel target = $region3
  $region8: #{protein_net_forward.1} parent=0 // loop_exit
    _

</llo_original>
